<compile_context>
chip_gen: v5e
topology: v5e:2x2
jax: 0.10.0
libtpu: 0.0.40
codegen_flags: <defaults>
</compile_context>

<pallas_src>
import functools
import math

import jax
import jax.numpy as jnp
from jax import lax
from jax.experimental import pallas as pl
from jax.experimental.pallas import tpu as pltpu


def _std_normal(shape):
    """Standard-normal tile from the in-kernel TPU PRNG (seed already set)."""
    if hasattr(pltpu, "stateful_normal"):
        return pltpu.stateful_normal(shape, jnp.float32)
    # Box-Muller fallback: use BOTH outputs (cos and sin) of every (u1, u2)
    # pair -> 2 transcendentals / element on the single EUP slot, and half the
    # prng_random_bits + u32->f32 VPU work.
    tm, cp = shape
    half = cp // 2                                   # cp is a multiple of 128
    b1 = pltpu.bitcast(pltpu.prng_random_bits((tm, half)), jnp.uint32)
    b2 = pltpu.bitcast(pltpu.prng_random_bits((tm, half)), jnp.uint32)
    u1 = ((b1 >> 8).astype(jnp.float32) + 1.0) * (1.0 / 16777216.0)   # (0, 1]
    u2 = (b2 >> 8).astype(jnp.float32) * (1.0 / 16777216.0)           # [0, 1)
    r = jnp.sqrt(-2.0 * jnp.log(u1))
    th = (2.0 * jnp.pi) * u2
    return jnp.concatenate([r * jnp.cos(th), r * jnp.sin(th)], axis=-1)


def _normalize_and_store(noise, o_ref, cols, scale):
    """noise: f32 (tm, cols_pad). Per-row L2-normalize over the real cols."""
    cp = noise.shape[-1]
    if cp != cols:
        # Zero the padded lanes so they do not perturb the row norm; padded
        # output columns are sliced off in the wrapper.
        col_ids = lax.broadcasted_iota(jnp.int32, noise.shape, 1)
        noise = jnp.where(col_ids < cols, noise, 0.0)
    # Per-row (= per (n, c) channel) L2 norm over the spatial axis.
    ssq = jnp.sum(noise * noise, axis=-1, keepdims=True)
    norm = jnp.sqrt(ssq)
    norm = jnp.where(norm != 0.0, norm, 1.0)
    o_ref[...] = (noise * (scale / norm)).astype(o_ref.dtype)


def _gaussian_tpu_kernel(seed_ref, o_ref, *, cols, scale):
    # Decorrelate tiles: splitmix-style salt (tile_id * large odd constant),
    # mixed with the user seed by the HW PRNG seeding itself. Deterministic
    # regardless of which TensorCore runs the tile.
    salt = (pl.program_id(0) + 1) * jnp.int32(-1640531527)   # 0x9E3779B9
    pltpu.prng_seed(seed_ref[0], salt)
    noise = _std_normal(o_ref.shape)
    _normalize_and_store(noise, o_ref, cols, scale)


def _gaussian_ref_kernel(noise_ref, o_ref, *, cols, scale):
    # Non-TPU / interpret fallback: noise comes in as an input block.
    _normalize_and_store(noise_ref[...].astype(jnp.float32), o_ref, cols, scale)


def gaussian_forward(grad, last_grad=None, last_adv=None, seed=0):
    """Pallas implementation of Gaussian.forward.

    Returns noise with grad's shape/dtype where each (n, c) channel equals
    z / ||z||_2 * sqrt(H*W) for z ~ N(0, I_{H*W}). grad / last_grad / last_adv
    values are unused, matching the PyTorch module.
    """
    n, c, h, w = grad.shape
    rows, cols = n * c, h * w
    cols_pad = max(128, ((cols + 127) // 128) * 128)        # lane-dense stores
    itemsize = jnp.dtype(grad.dtype).itemsize
    scale = math.sqrt(cols)                                 # sqrt(H*W)

    # ---- row-axis tiling -------------------------------------------------
    # Cap each materialized f32 temporary at ~2 MiB so PRNG/Box-Muller temps
    # plus the double-buffered output tile fit every generation's scoped VMEM.
    max_elems = 512 * 1024
    budget_rows = max(8, ((max_elems // cols_pad) // 8) * 8)
    if rows <= 8:
        tm = rows                                   # whole-dim block
    else:
        tm = min(budget_rows, (rows // 8) * 8)
        if 2 * tm > rows and rows >= 16:
            # v7x megacore: guarantee >= 2 parallel grid steps.
            tm = max(8, ((rows // 2) // 8) * 8)
    grid = (pl.cdiv(rows, tm),)
    # TODO(synk): for very large H*W (one row > ~2 MiB f32) add a column-tiled
    # two-pass (sum-of-squares accumulate, then rescale) path instead of tm=8.

    f32_tile = tm * cols_pad * 4
    out_tile = tm * cols_pad * itemsize
    vmem_limit = int(min(max(2 * out_tile + 6 * f32_tile + (1 << 20), 8 << 20),
                         40 << 20))

    on_tpu = jax.default_backend() == "tpu"
    if on_tpu:
        kernel = functools.partial(_gaussian_tpu_kernel, cols=cols, scale=scale)
        operands = (jnp.asarray([seed], dtype=jnp.int32),)
        in_specs = [pl.BlockSpec(memory_space=pltpu.MemorySpace.SMEM)]
        bytes_accessed = rows * cols_pad * itemsize          # write-only kernel
    else:
        # TODO(synk): pltpu PRNG has no CPU/interpret lowering, so off-TPU the
        # N(0,1) noise is drawn with jax.random and only normalized in-kernel.
        kernel = functools.partial(_gaussian_ref_kernel, cols=cols, scale=scale)
        noise = jax.random.normal(jax.random.PRNGKey(seed), (rows, cols_pad),
                                  dtype=jnp.float32)
        operands = (noise,)
        in_specs = [pl.BlockSpec((tm, cols_pad), lambda i: (i, 0))]
        bytes_accessed = rows * cols_pad * (itemsize + 4)

    out2d = pl.pallas_call(
        kernel,
        out_shape=jax.ShapeDtypeStruct((rows, cols_pad), grad.dtype),
        grid=grid,
        in_specs=in_specs,
        out_specs=pl.BlockSpec((tm, cols_pad), lambda i: (i, 0)),
        compiler_params=pltpu.CompilerParams(
            dimension_semantics=("parallel",),
            vmem_limit_bytes=vmem_limit,
        ),
        cost_estimate=pl.CostEstimate(
            flops=20 * rows * cols_pad,
            transcendentals=2 * rows * cols_pad,   # log+sqrt+cos+sin per pair
            bytes_accessed=bytes_accessed,
        ),
    )(*operands)

    if cols_pad != cols:
        out2d = out2d[:, :cols]
    return out2d.reshape(n, c, h, w)


if __name__ == "__main__":
    key = jax.random.PRNGKey(0)
    k_grad, k_lgrad, k_ladv = jax.random.split(key, 3)

    # Small NCHW shapes consistent with an adversarial-attack gradient tensor.
    shape = (2, 4, 16, 16)
    grad = jax.random.normal(k_grad, shape, dtype=jnp.float32)
    last_grad = jax.random.normal(k_lgrad, shape, dtype=jnp.float32)  # unused
    last_adv = jax.random.normal(k_ladv, shape, dtype=jnp.float32)    # unused

    out = gaussian_forward(grad, last_grad, last_adv, seed=0)
    out = jax.block_until_ready(out)

    # Sanity checks: shape/dtype, finiteness, and the defining invariant — every
    # (n, c) channel of the output has L2 norm exactly sqrt(H*W).
    # TODO(synk): the RNG stream cannot match torch.randn bit-for-bit.
    n, c, h, w = shape
    assert out.shape == shape and out.dtype == grad.dtype
    flat = out.reshape(n, c, h * w)
    norms = jnp.linalg.norm(flat, axis=-1)
    expected = jnp.sqrt(jnp.float32(h * w))
    assert bool(jnp.all(jnp.isfinite(out)))
    assert bool(jnp.allclose(norms, expected, rtol=1e-3, atol=1e-3))
    assert float(jnp.std(flat)) > 0.1  # noise actually varies

    print("KERNEL_OK")
</pallas_src>

<mosaic_0001>
module attributes {stable_mosaic.version = 11 : i64} {
  func.func @_gaussian_ref_kernel(%arg0: i32, %arg1: memref<8x256xf32, #tpu.memory_space<vmem>>, %arg2: memref<8x256xf32, #tpu.memory_space<vmem>>) attributes {dimension_semantics = [#tpu.dimension_semantics<parallel>], iteration_bounds = array<i64: 1>, scalar_prefetch = 0 : i64, scratch_operands = 0 : i64, tpu.core_type = #tpu.core_type<tc>, window_params = [{transform_indices = @transform_0, window_bounds = array<i64: 8, 256>}, {transform_indices = @transform_1, window_bounds = array<i64: 8, 256>}]} {
    %c0 = arith.constant 0 : index
    %c0_0 = arith.constant 0 : index
    %0 = vector.load %arg1[%c0, %c0_0] : memref<8x256xf32, #tpu.memory_space<vmem>>, vector<8x256xf32>
    %1 = arith.mulf %0, %0 : vector<8x256xf32>
    %cst = arith.constant dense<0.000000e+00> : vector<8xf32>
    %2 = vector.multi_reduction <add>, %1, %cst [1] : vector<8x256xf32> to vector<8xf32>
    %3 = vector.shape_cast %2 : vector<8xf32> to vector<8x1xf32>
    %4 = math.sqrt %3 : vector<8x1xf32>
    %cst_1 = arith.constant 0.000000e+00 : f32
    %5 = vector.broadcast %cst_1 : f32 to vector<8x1xf32>
    %6 = arith.cmpf one, %4, %5 : vector<8x1xf32>
    %cst_2 = arith.constant 1.000000e+00 : f32
    %7 = vector.broadcast %cst_2 : f32 to vector<8x1xf32>
    %8 = arith.select %6, %4, %7 : vector<8x1xi1>, vector<8x1xf32>
    %cst_3 = arith.constant 1.600000e+01 : f32
    %9 = vector.broadcast %cst_3 : f32 to vector<8x1xf32>
    %10 = arith.divf %9, %8 : vector<8x1xf32>
    %11 = vector.broadcast %10 : vector<8x1xf32> to vector<8x256xf32>
    %12 = arith.mulf %0, %11 : vector<8x256xf32>
    %c0_4 = arith.constant 0 : index
    %c0_5 = arith.constant 0 : index
    %13 = vector.load %arg2[%c0_4, %c0_5] : memref<8x256xf32, #tpu.memory_space<vmem>>, vector<8x256xf32>
    tpu.vector_store %arg2[%c0_4, %c0_5], %12 {strides = array<i32>} : memref<8x256xf32, #tpu.memory_space<vmem>>, vector<8x256xf32>,
    return
  }
  func.func @transform_0(%arg0: i32) -> (i32, i32) {
    %c0_i32 = arith.constant 0 : i32
    %c0_i32_0 = arith.constant 0 : i32
    return %arg0, %c0_i32 : i32, i32
  }
  func.func @transform_1(%arg0: i32) -> (i32, i32) {
    %c0_i32 = arith.constant 0 : i32
    %c0_i32_0 = arith.constant 0 : i32
    return %arg0, %c0_i32 : i32, i32
  }
}

</mosaic_0001>

<llo_original>
// kernel: tpu_custom_call.1
$region0: #{tpu_custom_call.1}
  #allocation0 [shape = 'u32[]', space=smem, size = 0x4, offset = 0x4, fixed_abs, tag = 'smem constant byte address 0x4 - core index']
  #allocation1 [shape = 'u32[72,128]{1,0:T(1,128)}', space=vmem, size = 0x9000, scoped, tag = 'internal scratch']
  %s0 = inlined_call_operand.hbm [shape: f32[8,256], index: 0, kind: input, shape index: {}]
  %s1 = inlined_call_operand.hbm [shape: f32[8,256], index: 1, kind: output, shape index: {}]
  %s2 = sld [smem:[#allocation0]]
  $region18: #{tpu_custom_call.1} parent=0
    _
  %s4 = ssub.s32 1, %s2
  %s5 = scalar_select 0, %s4, %s2
  $region1: #{tpu_custom_call.1} parent=0
    #allocation2 [shape = 'u8[8192]{0}', space=vmem, size = 0x2000, scoped, tag = 'input window, operand 0, single buffered']
    #allocation3 [shape = 's32[1]{0}', space=sflag, size = 0x4, scoped, tag = 'scoped memory for tpu_custom_call.1']
    #allocation4 [shape = 's32[1]{0}', space=sflag, size = 0x4, scoped, tag = 'scoped memory for tpu_custom_call.1']
    #allocation5 [shape = 'u8[8192]{0}', space=vmem, size = 0x2000, scoped, tag = 'output window, operand 0, single buffered']
    %6 = vsyncpa [#allocation3], 0
    %7 = vsyncpa [#allocation4], 0
    // Predicated region
    $region2: #{tpu_custom_call.1} parent=1 // pred_check
      _
    $region3: #{tpu_custom_call.1} parent=1 // pred_check_branch
      %9 = sbr.rel (0) target = $region5
    $region4: #{tpu_custom_call.1} parent=1 // pred_region
      %11 = vsyncadd [#allocation3], 0
      %s13 = sshll.u32 %s0, 4
      %s14 = int_to_ptr.hbm [resolvable:$true] %s13
      %s15 = sshll.u32 [#allocation2], 4
      %s16 = int_to_ptr.vmem [resolvable:$true] %s15
      %18 = dma.hbm_to_vmem [thread:$0]  %s14, 256, %s16, [#allocation3]
    $region5: #{tpu_custom_call.1} parent=1 // pred_fallthru
      _
    // Predicated region
    $region6: #{tpu_custom_call.1} parent=1 // pred_check
      _
    $region7: #{tpu_custom_call.1} parent=1 // pred_check_branch
      %20 = sbr.rel (0) target = $region9
    $region8: #{tpu_custom_call.1} parent=1 // pred_region
      %22 = dma.done [#allocation3], 256
    $region9: #{tpu_custom_call.1} parent=1 // pred_fallthru
      _
    %v23 = vld [vmem:[#allocation2] sm:$0xff]
    %v24 = vld [vmem:[#allocation2 + $0x8] sm:$0xff]
    %v25 = vmul.f32 %v23, %v23
    %v26 = vmul.f32 %v24, %v24
    %v27 = vadd.f32 %v25, %v26
    %28 = vadd.xlane.f32.xlu0 %v27
    %v29 = vpop.xlane.xlu0 %28
    %v30 = vrsqrt.pop %v29
    %v31 = vmul.f32 %v30, %v29
    %v32 = vmul.f32 %v31, %v30
    %v33 = vmul.f32 0.5, %v32
    %v34 = vsub.f32 1.5, %v33
    %v35 = vmul.f32 %v30, %v34
    %v36 = vmul.f32 %v29, %v35
    %vm37 = vcmp.eq.f32.partialorder %v29, inf
    %v38 = vsel %vm37, %v29, %v36
    %vm39 = vcmp.eq.f32.partialorder %v29, 0.0
    %v40 = vand.u32 %v29, 2147483648
    %v41 = vsel %vm39, %v40, %v38
    %vm42 = vcmp.ne.f32.partialorder %v41, 0.0
    %v43 = vsel %vm42, %v41, 1.0
    %v44 = vrcp.pop %v43
    %v45 = vmul.f32 %v43, %v44
    %v46 = vsub.f32 1.0, %v45
    %v47 = vmul.f32 %v44, %v46
    %v48 = vadd.f32 %v44, %v47
    %vm49 = vweird.f32 %v43
    %vm50 = vweird.f32 %v44
    %vm51 = vmor %vm49, %vm50
    %v52 = vsel %vm51, %v44, %v48
    %v53 = vand.u32 2147483647, %v43
    %vm54 = vcmp.eq.f32.partialorder %v53, 8.507059e+37
    %v55 = vand.u32 %v43, 2147483648
    %v56 = vor.u32 1.1754944e-38, %v55
    %v57 = vsel %vm54, %v56, %v52
    %v58 = vmul.f32 16.0, %v57
    %v59 = vmul.f32 %v23, %v58
    %v60 = vmul.f32 %v24, %v58
    %61 = vst [vmem:[#allocation5] sm:$0xff] %v59
    %62 = vst [vmem:[#allocation5 + $0x8] sm:$0xff] %v60
    // Predicated region
    $region10: #{tpu_custom_call.1} parent=1 // pred_check
      _
    $region11: #{tpu_custom_call.1} parent=1 // pred_check_branch
      %64 = sbr.rel (0) target = $region13
    $region12: #{tpu_custom_call.1} parent=1 // pred_region
      %66 = vsyncadd [#allocation4], 0
      %s68 = sshll.u32 [#allocation5], 4
      %s69 = int_to_ptr.vmem [resolvable:$true] %s68
      %s70 = sshll.u32 %s1, 4
      %s71 = int_to_ptr.hbm [resolvable:$true] %s70
      %73 = dma.vmem_to_hbm [thread:$0]  %s69, 256, %s71, [#allocation4]
    $region13: #{tpu_custom_call.1} parent=1 // pred_fallthru
      _
    // Predicated region
    $region14: #{tpu_custom_call.1} parent=1 // pred_check
      _
    $region15: #{tpu_custom_call.1} parent=1 // pred_check_branch
      %75 = sbr.rel (0) target = $region17
    $region16: #{tpu_custom_call.1} parent=1 // pred_region
      %77 = dma.done [#allocation4], 256
    $region17: #{tpu_custom_call.1} parent=1 // pred_fallthru
      _
    %78 = vsyncpa [#allocation3], 1
    %79 = vsyncpa [#allocation4], 1

</llo_original>
